<compile_context>
chip_gen: v7x
topology: tpu7x:2x2x1
jax: 0.10.0
libtpu: 0.0.40
codegen_flags: <defaults>
</compile_context>

<pallas_src>
import functools

import jax
import jax.numpy as jnp
from jax import lax
from jax.experimental import pallas as pl
from jax.experimental.pallas import tpu as pltpu

MEAN = 0.0
STD = 0.4

LANES = 512          # lane-dense last dim -> unmasked vector stores everywhere
MAX_TILE_ROWS = 256  # 256x512 f32 = 512 KiB/tile; safe on v5e/v6e/v7x VMEM

_TWO_PI = 6.283185307179586
_INV_2_24 = 1.0 / (1 << 24)


def _round_up(a, b):
    return (a + b - 1) // b * b


def _hash_u32(x, k):
    """Stateless 32-bit hash ("lowbias32" finalizer) — pure VPU int ops."""
    h = x ^ k
    h = (h ^ (h >> 16)) * jnp.uint32(0x7FEB352D)
    h = (h ^ (h >> 15)) * jnp.uint32(0x846CA68B)
    h = h ^ (h >> 16)
    return h


def _uniform_open01(bits):
    """uint32 bits -> float32 uniform in (0, 1), top 24 bits, bucket-centered.

    Note: 24-bit uniforms bound the Gaussian tail at ~5.9 sigma; fine for
    noise injection.
    """
    b24 = (bits >> 8).astype(jnp.int32)          # value < 2^24, safe as int32
    return (b24.astype(jnp.float32) + jnp.float32(0.5)) * jnp.float32(_INV_2_24)


def _gaussian_noise_kernel(seed_ref, x_ref, o_ref, *, mean, std):
    tm, lanes = x_ref.shape
    half = tm // 2  # tm is a multiple of 16, so halves stay (8,128)-aligned

    # One (u1, u2) pair per *half*-tile element: Box-Muller yields two
    # independent normals (cos and sin branches) -> covers the full tile.
    i = pl.program_id(0)
    row = lax.broadcasted_iota(jnp.int32, (half, lanes), 0)
    col = lax.broadcasted_iota(jnp.int32, (half, lanes), 1)
    ctr = ((i * half + row) * lanes + col).astype(jnp.uint32)  # globally unique

    seed = seed_ref[0].astype(jnp.uint32)
    k1 = seed * jnp.uint32(0x9E3779B9) + jnp.uint32(0x85EBCA6B)
    k2 = seed * jnp.uint32(0xC2B2AE35) + jnp.uint32(0x27D4EB2F)
    u1 = _uniform_open01(_hash_u32(ctr, k1))
    u2 = _uniform_open01(_hash_u32(ctr, k2))

    # Box-Muller with std folded into the radius (EUP: log/sqrt/cos/sin).
    r = jnp.float32(std) * jnp.sqrt(jnp.float32(-2.0) * jnp.log(u1))
    theta = jnp.float32(_TWO_PI) * u2
    z_top = r * jnp.cos(theta)
    z_bot = r * jnp.sin(theta)

    m = jnp.float32(mean)
    o_ref[0:half, :] = (
        x_ref[0:half, :].astype(jnp.float32) + z_top + m
    ).astype(o_ref.dtype)
    o_ref[half:tm, :] = (
        x_ref[half:tm, :].astype(jnp.float32) + z_bot + m
    ).astype(o_ref.dtype)


def gaussian_noise(x, seed, *, mean=MEAN, std=STD):
    """Returns x + N(mean, std^2) noise, same shape/dtype as x."""
    orig_shape = x.shape
    orig_dtype = x.dtype
    total = x.size

    # Lane-dense flatten independent of H*W alignment; pad tail, slice later.
    rows = (total + LANES - 1) // LANES
    tm = min(MAX_TILE_ROWS, _round_up(rows, 16))  # even halves, (8,128)-aligned
    rows_padded = _round_up(rows, tm)
    padded_total = rows_padded * LANES

    flat = x.reshape(-1)
    if padded_total != total:
        flat = jnp.pad(flat, (0, padded_total - total))
    x2d = flat.reshape(rows_padded, LANES)

    seed_arr = jnp.asarray([seed], dtype=jnp.int32)
    kernel = functools.partial(_gaussian_noise_kernel, mean=mean, std=std)

    out2d = pl.pallas_call(
        kernel,
        out_shape=jax.ShapeDtypeStruct((rows_padded, LANES), orig_dtype),
        grid_spec=pltpu.PrefetchScalarGridSpec(
            num_scalar_prefetch=1,
            grid=(rows_padded // tm,),
            in_specs=[pl.BlockSpec((tm, LANES), lambda i, seed: (i, 0))],
            out_specs=pl.BlockSpec((tm, LANES), lambda i, seed: (i, 0)),
        ),
        compiler_params=pltpu.CompilerParams(
            dimension_semantics=("parallel",),
        ),
    )(seed_arr, x2d)

    return out2d.reshape(-1)[:total].reshape(orig_shape)


if __name__ == "__main__":
    key = jax.random.PRNGKey(0)
    # Small NCHW input consistent with the conv-style module.
    x = jax.random.normal(key, (2, 4, 16, 16), dtype=jnp.float32)

    y = gaussian_noise(x, seed=1234)
    y = jax.block_until_ready(y)

    # Sanity checks: shape/dtype preserved; residual noise has the right scale.
    assert y.shape == x.shape and y.dtype == x.dtype
    noise = y - x
    noise_std = float(jnp.std(noise))
    noise_mean = float(jnp.mean(noise))
    assert abs(noise_std - STD) < 0.1, noise_std
    assert abs(noise_mean - MEAN) < 0.1, noise_mean

    print("KERNEL_OK")
</pallas_src>

<mosaic_0001>
module attributes {stable_mosaic.version = 11 : i64} {
  func.func @_gaussian_noise_kernel(%arg0: i32, %arg1: memref<1xi32, #tpu.memory_space<smem>>, %arg2: memref<16x512xf32, #tpu.memory_space<vmem>>, %arg3: memref<16x512xf32, #tpu.memory_space<vmem>>) attributes {dimension_semantics = [#tpu.dimension_semantics<parallel>], iteration_bounds = array<i64: 1>, scalar_prefetch = 1 : i64, scratch_operands = 0 : i64, tpu.core_type = #tpu.core_type<tc>, window_params = [{transform_indices = @transform_0, window_bounds = array<i64: 16, 512>}, {transform_indices = @transform_1, window_bounds = array<i64: 16, 512>}]} {
    %0 = tpu.iota {dimensions = array<i32: 0>} : vector<8x512xi32>
    %1 = tpu.iota {dimensions = array<i32: 1>} : vector<8x512xi32>
    %c8_i32 = arith.constant 8 : i32
    %2 = arith.muli %arg0, %c8_i32 : i32
    %3 = vector.broadcast %2 : i32 to vector<8x512xi32>
    %4 = arith.addi %3, %0 : vector<8x512xi32>
    %c512_i32 = arith.constant 512 : i32
    %5 = vector.broadcast %c512_i32 : i32 to vector<8x512xi32>
    %6 = arith.muli %4, %5 : vector<8x512xi32>
    %7 = arith.addi %6, %1 : vector<8x512xi32>
    %c0 = arith.constant 0 : index
    %8 = memref.load %arg1[%c0] : memref<1xi32, #tpu.memory_space<smem>>
    %c-1640531527_i32 = arith.constant -1640531527 : i32
    %9 = arith.muli %8, %c-1640531527_i32 : i32
    %c-2048144789_i32 = arith.constant -2048144789 : i32
    %10 = arith.addi %9, %c-2048144789_i32 : i32
    %c-1028477387_i32 = arith.constant -1028477387 : i32
    %11 = arith.muli %8, %c-1028477387_i32 : i32
    %c668265263_i32 = arith.constant 668265263 : i32
    %12 = arith.addi %11, %c668265263_i32 : i32
    %13 = vector.broadcast %10 : i32 to vector<8x512xi32>
    %14 = arith.xori %7, %13 : vector<8x512xi32>
    %c16_i32 = arith.constant 16 : i32
    %15 = vector.broadcast %c16_i32 : i32 to vector<8x512xi32>
    %16 = arith.shrui %14, %15 : vector<8x512xi32>
    %17 = arith.xori %14, %16 : vector<8x512xi32>
    %c2146121005_i32 = arith.constant 2146121005 : i32
    %18 = vector.broadcast %c2146121005_i32 : i32 to vector<8x512xi32>
    %19 = arith.muli %17, %18 : vector<8x512xi32>
    %c15_i32 = arith.constant 15 : i32
    %20 = vector.broadcast %c15_i32 : i32 to vector<8x512xi32>
    %21 = arith.shrui %19, %20 : vector<8x512xi32>
    %22 = arith.xori %19, %21 : vector<8x512xi32>
    %c-2073254261_i32 = arith.constant -2073254261 : i32
    %23 = vector.broadcast %c-2073254261_i32 : i32 to vector<8x512xi32>
    %24 = arith.muli %22, %23 : vector<8x512xi32>
    %c16_i32_0 = arith.constant 16 : i32
    %25 = vector.broadcast %c16_i32_0 : i32 to vector<8x512xi32>
    %26 = arith.shrui %24, %25 : vector<8x512xi32>
    %27 = arith.xori %24, %26 : vector<8x512xi32>
    %c8_i32_1 = arith.constant 8 : i32
    %28 = vector.broadcast %c8_i32_1 : i32 to vector<8x512xi32>
    %29 = arith.shrui %27, %28 : vector<8x512xi32>
    %30 = arith.sitofp %29 : vector<8x512xi32> to vector<8x512xf32>
    %cst = arith.constant 5.000000e-01 : f32
    %31 = vector.broadcast %cst : f32 to vector<8x512xf32>
    %32 = arith.addf %30, %31 : vector<8x512xf32>
    %cst_2 = arith.constant 5.96046448E-8 : f32
    %33 = vector.broadcast %cst_2 : f32 to vector<8x512xf32>
    %34 = arith.mulf %32, %33 : vector<8x512xf32>
    %35 = vector.broadcast %12 : i32 to vector<8x512xi32>
    %36 = arith.xori %7, %35 : vector<8x512xi32>
    %c16_i32_3 = arith.constant 16 : i32
    %37 = vector.broadcast %c16_i32_3 : i32 to vector<8x512xi32>
    %38 = arith.shrui %36, %37 : vector<8x512xi32>
    %39 = arith.xori %36, %38 : vector<8x512xi32>
    %c2146121005_i32_4 = arith.constant 2146121005 : i32
    %40 = vector.broadcast %c2146121005_i32_4 : i32 to vector<8x512xi32>
    %41 = arith.muli %39, %40 : vector<8x512xi32>
    %c15_i32_5 = arith.constant 15 : i32
    %42 = vector.broadcast %c15_i32_5 : i32 to vector<8x512xi32>
    %43 = arith.shrui %41, %42 : vector<8x512xi32>
    %44 = arith.xori %41, %43 : vector<8x512xi32>
    %c-2073254261_i32_6 = arith.constant -2073254261 : i32
    %45 = vector.broadcast %c-2073254261_i32_6 : i32 to vector<8x512xi32>
    %46 = arith.muli %44, %45 : vector<8x512xi32>
    %c16_i32_7 = arith.constant 16 : i32
    %47 = vector.broadcast %c16_i32_7 : i32 to vector<8x512xi32>
    %48 = arith.shrui %46, %47 : vector<8x512xi32>
    %49 = arith.xori %46, %48 : vector<8x512xi32>
    %c8_i32_8 = arith.constant 8 : i32
    %50 = vector.broadcast %c8_i32_8 : i32 to vector<8x512xi32>
    %51 = arith.shrui %49, %50 : vector<8x512xi32>
    %52 = arith.sitofp %51 : vector<8x512xi32> to vector<8x512xf32>
    %cst_9 = arith.constant 5.000000e-01 : f32
    %53 = vector.broadcast %cst_9 : f32 to vector<8x512xf32>
    %54 = arith.addf %52, %53 : vector<8x512xf32>
    %cst_10 = arith.constant 5.96046448E-8 : f32
    %55 = vector.broadcast %cst_10 : f32 to vector<8x512xf32>
    %56 = arith.mulf %54, %55 : vector<8x512xf32>
    %57 = math.log %34 : vector<8x512xf32>
    %cst_11 = arith.constant -2.000000e+00 : f32
    %58 = vector.broadcast %cst_11 : f32 to vector<8x512xf32>
    %59 = arith.mulf %58, %57 : vector<8x512xf32>
    %60 = math.sqrt %59 : vector<8x512xf32>
    %cst_12 = arith.constant 4.000000e-01 : f32
    %61 = vector.broadcast %cst_12 : f32 to vector<8x512xf32>
    %62 = arith.mulf %61, %60 : vector<8x512xf32>
    %cst_13 = arith.constant 6.28318548 : f32
    %63 = vector.broadcast %cst_13 : f32 to vector<8x512xf32>
    %64 = arith.mulf %63, %56 : vector<8x512xf32>
    %65 = math.cos %64 : vector<8x512xf32>
    %66 = arith.mulf %62, %65 : vector<8x512xf32>
    %67 = math.sin %64 : vector<8x512xf32>
    %68 = arith.mulf %62, %67 : vector<8x512xf32>
    %c0_14 = arith.constant 0 : index
    %c0_15 = arith.constant 0 : index
    %69 = vector.load %arg2[%c0_14, %c0_15] : memref<16x512xf32, #tpu.memory_space<vmem>>, vector<8x512xf32>
    %70 = arith.addf %69, %66 : vector<8x512xf32>
    %cst_16 = arith.constant 0.000000e+00 : f32
    %71 = vector.broadcast %cst_16 : f32 to vector<8x512xf32>
    %72 = arith.addf %70, %71 : vector<8x512xf32>
    %c0_17 = arith.constant 0 : index
    %c0_18 = arith.constant 0 : index
    %73 = vector.load %arg3[%c0_17, %c0_18] : memref<16x512xf32, #tpu.memory_space<vmem>>, vector<8x512xf32>
    tpu.vector_store %arg3[%c0_17, %c0_18], %72 {strides = array<i32>} : memref<16x512xf32, #tpu.memory_space<vmem>>, vector<8x512xf32>,
    %c8 = arith.constant 8 : index
    %c0_19 = arith.constant 0 : index
    %74 = vector.load %arg2[%c8, %c0_19] : memref<16x512xf32, #tpu.memory_space<vmem>>, vector<8x512xf32>
    %75 = arith.addf %74, %68 : vector<8x512xf32>
    %cst_20 = arith.constant 0.000000e+00 : f32
    %76 = vector.broadcast %cst_20 : f32 to vector<8x512xf32>
    %77 = arith.addf %75, %76 : vector<8x512xf32>
    %c8_21 = arith.constant 8 : index
    %c0_22 = arith.constant 0 : index
    %78 = vector.load %arg3[%c8_21, %c0_22] : memref<16x512xf32, #tpu.memory_space<vmem>>, vector<8x512xf32>
    tpu.vector_store %arg3[%c8_21, %c0_22], %77 {strides = array<i32>} : memref<16x512xf32, #tpu.memory_space<vmem>>, vector<8x512xf32>,
    return
  }
  func.func @transform_0(%arg0: i32, %arg1: memref<1xi32, #tpu.memory_space<smem>>) -> (i32, i32) {
    %c0_i32 = arith.constant 0 : i32
    %c0_i32_0 = arith.constant 0 : i32
    return %arg0, %c0_i32 : i32, i32
  }
  func.func @transform_1(%arg0: i32, %arg1: memref<1xi32, #tpu.memory_space<smem>>) -> (i32, i32) {
    %c0_i32 = arith.constant 0 : i32
    %c0_i32_0 = arith.constant 0 : i32
    return %arg0, %c0_i32 : i32, i32
  }
}

</mosaic_0001>

<llo_original>
// kernel: tpu_custom_call.1
$region0: #{tpu_custom_call.1}
  #allocation0 [shape = 'u32[]', space=smem, size = 0x4, offset = 0x4, fixed_abs, tag = 'smem constant byte address 0x4 - core index']
  #allocation1 [shape = 'u32[144,128]{1,0:T(1,128)}', space=vmem, size = 0x12000, scoped, tag = 'internal scratch']
  #allocation2 [shape = 's32[1]{0}', space=sflag, size = 0x4, scoped, tag = 'scoped memory for tpu_custom_call.1']
  #allocation3 [shape = 's32[1]{0:T(128)S(6)}', space=smem, size = 0x200, scoped, tag = 'prefetched SMEM operand 0']
  %s0 = inlined_call_operand.<no memory space> [shape: s32[1], index: 0, kind: input, shape index: {}]
  %s1 = inlined_call_operand.hbm [shape: f32[16,512], index: 1, kind: input, shape index: {}]
  %s2 = inlined_call_operand.hbm [shape: f32[16,512], index: 2, kind: output, shape index: {}]
  %s3 = sld [smem:[#allocation0]]
  $region18: #{tpu_custom_call.1} parent=0
    _
  %s5 = ssub.s32 1, %s3
  %s6 = scalar_select 0, %s5, %s3
  %7 = sst [smem:[#allocation3]] %s0
  $region1: #{tpu_custom_call.1} parent=0
    #allocation4 [shape = 'u8[32768]{0}', space=vmem, size = 0x8000, scoped, tag = 'input window, operand 1, single buffered']
    #allocation5 [shape = 's32[1]{0}', space=sflag, size = 0x4, scoped, tag = 'scoped memory for tpu_custom_call.1']
    #allocation6 [shape = 's32[1]{0}', space=sflag, size = 0x4, scoped, tag = 'scoped memory for tpu_custom_call.1']
    #allocation7 [shape = 'u8[32768]{0}', space=vmem, size = 0x8000, scoped, tag = 'output window, operand 0, single buffered']
    %8 = vsyncpa [#allocation5], 0
    %9 = vsyncpa [#allocation6], 0
    // Predicated region
    $region2: #{tpu_custom_call.1} parent=1 // pred_check
      _
    $region3: #{tpu_custom_call.1} parent=1 // pred_check_branch
      %11 = sbr.rel (0) target = $region5
    $region4: #{tpu_custom_call.1} parent=1 // pred_region
      %s13 = ssub.s32 1024, 1024
      %14 = vsyncadd [#allocation5], %s13
      %s15 = sshll.u32 [#allocation4], 4
      %s16 = int_to_ptr.vmem [resolvable:$true] %s15
      %21 = dma.hbm_to_vmem [thread:$0]  %s1, 1024, %s16, [#allocation5], 512, 512, 32
    $region5: #{tpu_custom_call.1} parent=1 // pred_fallthru
      _
    // Predicated region
    $region6: #{tpu_custom_call.1} parent=1 // pred_check
      _
    $region7: #{tpu_custom_call.1} parent=1 // pred_check_branch
      %23 = sbr.rel (0) target = $region9
    $region8: #{tpu_custom_call.1} parent=1 // pred_region
      %24 = dma.done [#allocation5], 1024
    $region9: #{tpu_custom_call.1} parent=1 // pred_fallthru
      _
    %v25 = vlaneseq
    %v26 = vshrl.u32 %v25, 7
    %v27 = vlaneseq
    %v28 = vand.u32 %v27, 127
    %v29 = vadd.s32 %v28, 128
    %v30 = vadd.s32 %v28, 256
    %v31 = vadd.s32 %v28, 384
    %s32 = smul.u32 0, 8
    %v33 = vstv %s32
    %v34 = vadd.s32 %v33, %v26
    %v35 = vmul.u32 %v34, 512
    %v36 = vadd.s32 %v35, %v28
    %v37 = vadd.s32 %v35, %v29
    %v38 = vadd.s32 %v35, %v30
    %v39 = vadd.s32 %v35, %v31
    %s40 = sld [smem:[#allocation3]]
    %s41 = smul.u32 %s40, 2654435769
    %s42 = sadd.s32 %s41, 2246822507
    %s43 = smul.u32 %s40, 3266489909
    %s44 = sadd.s32 %s43, 668265263
    %v45 = vstv %s42
    %v46 = vxor.u32 %v36, %v45
    %v47 = vxor.u32 %v37, %v45
    %v48 = vxor.u32 %v38, %v45
    %v49 = vxor.u32 %v39, %v45
    %v50 = vshrl.u32 %v46, 16
    %v51 = vshrl.u32 %v47, 16
    %v52 = vshrl.u32 %v48, 16
    %v53 = vshrl.u32 %v49, 16
    %v54 = vxor.u32 %v46, %v50
    %v55 = vxor.u32 %v47, %v51
    %v56 = vxor.u32 %v48, %v52
    %v57 = vxor.u32 %v49, %v53
    %v58 = vmul.u32 %v54, 2146121005
    %v59 = vmul.u32 %v55, 2146121005
    %v60 = vmul.u32 %v56, 2146121005
    %v61 = vmul.u32 %v57, 2146121005
    %v62 = vshrl.u32 %v58, 15
    %v63 = vshrl.u32 %v59, 15
    %v64 = vshrl.u32 %v60, 15
    %v65 = vshrl.u32 %v61, 15
    %v66 = vxor.u32 %v58, %v62
    %v67 = vxor.u32 %v59, %v63
    %v68 = vxor.u32 %v60, %v64
    %v69 = vxor.u32 %v61, %v65
    %v70 = vmul.u32 %v66, 2221713035
    %v71 = vmul.u32 %v67, 2221713035
    %v72 = vmul.u32 %v68, 2221713035
    %v73 = vmul.u32 %v69, 2221713035
    %v74 = vshrl.u32 %v70, 16
    %v75 = vshrl.u32 %v71, 16
    %v76 = vshrl.u32 %v72, 16
    %v77 = vshrl.u32 %v73, 16
    %v78 = vxor.u32 %v70, %v74
    %v79 = vxor.u32 %v71, %v75
    %v80 = vxor.u32 %v72, %v76
    %v81 = vxor.u32 %v73, %v77
    %v82 = vshrl.u32 %v78, 8
    %v83 = vshrl.u32 %v79, 8
    %v84 = vshrl.u32 %v80, 8
    %v85 = vshrl.u32 %v81, 8
    %v86 = vcvt.s32.f32 %v82
    %v87 = vcvt.s32.f32 %v83
    %v88 = vcvt.s32.f32 %v84
    %v89 = vcvt.s32.f32 %v85
    %v90 = vadd.f32 %v86, 0.5
    %v91 = vadd.f32 %v87, 0.5
    %v92 = vadd.f32 %v88, 0.5
    %v93 = vadd.f32 %v89, 0.5
    %v94 = vmul.f32 %v90, 5.9604645e-08
    %v95 = vmul.f32 %v91, 5.9604645e-08
    %v96 = vmul.f32 %v92, 5.9604645e-08
    %v97 = vmul.f32 %v93, 5.9604645e-08
    %v98 = vstv %s44
    %v99 = vxor.u32 %v36, %v98
    %v100 = vxor.u32 %v37, %v98
    %v101 = vxor.u32 %v38, %v98
    %v102 = vxor.u32 %v39, %v98
    %v103 = vshrl.u32 %v99, 16
    %v104 = vshrl.u32 %v100, 16
    %v105 = vshrl.u32 %v101, 16
    %v106 = vshrl.u32 %v102, 16
    %v107 = vxor.u32 %v99, %v103
    %v108 = vxor.u32 %v100, %v104
    %v109 = vxor.u32 %v101, %v105
    %v110 = vxor.u32 %v102, %v106
    %v111 = vmul.u32 %v107, 2146121005
    %v112 = vmul.u32 %v108, 2146121005
    %v113 = vmul.u32 %v109, 2146121005
    %v114 = vmul.u32 %v110, 2146121005
    %v115 = vshrl.u32 %v111, 15
    %v116 = vshrl.u32 %v112, 15
    %v117 = vshrl.u32 %v113, 15
    %v118 = vshrl.u32 %v114, 15
    %v119 = vxor.u32 %v111, %v115
    %v120 = vxor.u32 %v112, %v116
    %v121 = vxor.u32 %v113, %v117
    %v122 = vxor.u32 %v114, %v118
    %v123 = vmul.u32 %v119, 2221713035
    %v124 = vmul.u32 %v120, 2221713035
    %v125 = vmul.u32 %v121, 2221713035
    %v126 = vmul.u32 %v122, 2221713035
    %v127 = vshrl.u32 %v123, 16
    %v128 = vshrl.u32 %v124, 16
    %v129 = vshrl.u32 %v125, 16
    %v130 = vshrl.u32 %v126, 16
    %v131 = vxor.u32 %v123, %v127
    %v132 = vxor.u32 %v124, %v128
    %v133 = vxor.u32 %v125, %v129
    %v134 = vxor.u32 %v126, %v130
    %v135 = vshrl.u32 %v131, 8
    %v136 = vshrl.u32 %v132, 8
    %v137 = vshrl.u32 %v133, 8
    %v138 = vshrl.u32 %v134, 8
    %v139 = vcvt.s32.f32 %v135
    %v140 = vcvt.s32.f32 %v136
    %v141 = vcvt.s32.f32 %v137
    %v142 = vcvt.s32.f32 %v138
    %v143 = vadd.f32 %v139, 0.5
    %v144 = vadd.f32 %v140, 0.5
    %v145 = vadd.f32 %v141, 0.5
    %v146 = vadd.f32 %v142, 0.5
    %v147 = vmul.f32 %v143, 5.9604645e-08
    %v148 = vmul.f32 %v144, 5.9604645e-08
    %v149 = vmul.f32 %v145, 5.9604645e-08
    %v150 = vmul.f32 %v146, 5.9604645e-08
    %v151 = vlog2.pop %v94
    %v152 = vmul.f32 %v151, 0.6931472
    %v153 = vlog2.pop %v95
    %v154 = vmul.f32 %v153, 0.6931472
    %v155 = vlog2.pop %v96
    %v156 = vmul.f32 %v155, 0.6931472
    %v157 = vlog2.pop %v97
    %v158 = vmul.f32 %v157, 0.6931472
    %v159 = vmul.f32 %v152, -2.0
    %v160 = vmul.f32 %v154, -2.0
    %v161 = vmul.f32 %v156, -2.0
    %v162 = vmul.f32 %v158, -2.0
    %v163 = vrsqrt.pop %v159
    %v164 = vmul.f32 %v159, %v163
    %vm165 = vcmp.eq.f32.partialorder %v159, inf
    %v166 = vsel %vm165, %v159, %v164
    %vm167 = vcmp.eq.f32.partialorder %v159, 0.0
    %v168 = vand.u32 %v159, 2147483648
    %v169 = vsel %vm167, %v168, %v166
    %v170 = vrsqrt.pop %v160
    %v171 = vmul.f32 %v160, %v170
    %vm172 = vcmp.eq.f32.partialorder %v160, inf
    %v173 = vsel %vm172, %v160, %v171
    %vm174 = vcmp.eq.f32.partialorder %v160, 0.0
    %v175 = vand.u32 %v160, 2147483648
    %v176 = vsel %vm174, %v175, %v173
    %v177 = vrsqrt.pop %v161
    %v178 = vmul.f32 %v161, %v177
    %vm179 = vcmp.eq.f32.partialorder %v161, inf
    %v180 = vsel %vm179, %v161, %v178
    %vm181 = vcmp.eq.f32.partialorder %v161, 0.0
    %v182 = vand.u32 %v161, 2147483648
    %v183 = vsel %vm181, %v182, %v180
    %v184 = vrsqrt.pop %v162
    %v185 = vmul.f32 %v162, %v184
    %vm186 = vcmp.eq.f32.partialorder %v162, inf
    %v187 = vsel %vm186, %v162, %v185
    %vm188 = vcmp.eq.f32.partialorder %v162, 0.0
    %v189 = vand.u32 %v162, 2147483648
    %v190 = vsel %vm188, %v189, %v187
    %v191 = vmul.f32 %v169, 0.4
    %v192 = vmul.f32 %v176, 0.4
    %v193 = vmul.f32 %v183, 0.4
    %v194 = vmul.f32 %v190, 0.4
    %v195 = vmul.f32 %v147, 6.2831855
    %v196 = vmul.f32 %v148, 6.2831855
    %v197 = vmul.f32 %v149, 6.2831855
    %v198 = vmul.f32 %v150, 6.2831855
    %v199 = vand.u32 2147483647, %v195
    %vm200 = vcmp.le.f32.partialorder %v199, 0.7853982
    %vm201 = vcmp.lt.s32.totalorder %v195, 0
    %v202 = vand.u32 %v195, 2139095040
    %v203 = vshrl.u32 %v202, 23
    %v204 = vsub.s32 %v203, 127
    %v205 = vand.u32 2147483647, %v195
    %v206 = vand.u32 %v205, 8388607
    %v207 = vor.u32 %v206, 8388608
    %v208 = vsub.s32 0, %v207
    %v209 = vadd.s32 %v204, 1
    %vm210 = vcmp.gt.s32.totalorder %v209, 0
    %v211 = vsel %vm210, %v209, 0
    %v212 = vshrl.u32 %v211, 5
    %v213 = vand.u32 %v211, 31
    %v214 = vsub.s32 32, %v213
    %v215 = vshrl.u32 683565275, %v214
    %v216 = vshll.u32 683565275, %v213
    %v217 = vshrl.u32 2475754826, %v214
    %v218 = vor.u32 %v216, %v217
    %v219 = vshll.u32 2475754826, %v213
    %v220 = vshrl.u32 2131351028, %v214
    %v221 = vor.u32 %v219, %v220
    %v222 = vshll.u32 2131351028, %v213
    %v223 = vshrl.u32 2102212464, %v214
    %v224 = vor.u32 %v222, %v223
    %v225 = vshll.u32 2102212464, %v213
    %v226 = vshrl.u32 920167782, %v214
    %v227 = vor.u32 %v225, %v226
    %v228 = vshll.u32 920167782, %v213
    %v229 = vshrl.u32 1326507024, %v214
    %v230 = vor.u32 %v228, %v229
    %vm231 = vcmp.lt.s32.totalorder %v212, 1
    %vm232 = vcmp.lt.s32.totalorder %v212, 2
    %vm233 = vcmp.lt.s32.totalorder %v212, 3
    %vm234 = vcmp.lt.s32.totalorder %v212, 4
    %v235 = vsel %vm231, %v215, %v218
    %v236 = vsel %vm234, %v224, 2102212464
    %v237 = vsel %vm233, %v221, %v236
    %v238 = vsel %vm232, %v235, %v237
    %v239 = vsel %vm231, %v218, %v221
    %v240 = vsel %vm234, %v227, 920167782
    %v241 = vsel %vm233, %v224, %v240
    %v242 = vsel %vm232, %v239, %v241
    %v243 = vsel %vm231, %v221, %v224
    %v244 = vsel %vm234, %v230, 1326507024
    %v245 = vsel %vm233, %v227, %v244
    %v246 = vsel %vm232, %v243, %v245
    %v247 = vshll.u32 %v207, 8
    %v248 = vmul.u32.u64.compose %v247, %v246
    %v249 = vextract.low.u32 %v248
    %v250 = vextract.high.u32 %v248
    %v251 = vmul.u32.u64.compose %v247, %v242
    %v252 = vextract.low.u32 %v251
    %v253 = vextract.high.u32 %v251
    %v254 = vmul.u32 %v247, %v238
    %v255 = vadd.s32 %v250, %v252
    %vm256 = vc.u32 %v250, %v252
    %v257 = vadd.s32 %v253, 1
    %v258 = vsel %vm256, %v257, %v253
    %v259 = vadd.s32 %v254, %v258
    %v260 = vadd.s32 %v259, 536870912
    %v261 = vshrl.u32 %v260, 30
    %v262 = vshll.u32 %v261, 30
    %v263 = vsub.s32 %v259, %v262
    %vm264 = vcmp.lt.s32.totalorder %v263, 0
    %v265 = vsub.s32 0, %v263
    %v266 = vsel %vm264, %v265, %v263
    %v267 = vclz %v266
    %v268 = vsub.s32 %v267, 2
    %vm269 = vcmp.gt.s32.totalorder 0, %v268
    %v270 = vsel %vm269, 0, %v268
    %v271 = vsub.s32 32, %v270
    %v272 = vshll.u32 %v263, %v270
    %v273 = vshrl.u32 %v255, %v271
    %v274 = vor.u32 %v272, %v273
    %v275 = vsub.s32 4294967266, %v270
    %v276 = vadd.s32 %v275, 127
    %v277 = vshll.u32 %v276, 23
    %v278 = vor.u32 4788187, %v277
    %v279 = vand.u32 2147483647, %v278
    %v281 = vcvt.s32.f32 %v274
    %v282 = vmul.f32 %v281, %v279
    %v283 = vxor.u32 %v282, 2147483648
    %v284 = vsel %vm201, %v283, %v282
    %v285 = vsub.s32 4, %v261
    %v286 = vsel %vm201, %v285, %v261
    %v287 = vsel %vm200, %v195, %v284
    %v288 = vsel %vm200, 0, %v286
    %v289 = vcosq.f32.pop %v287
    %v290 = vsinq.f32.pop %v287
    %vm291 = vweird.f32 %v195
    %v292 = vand.u32 %v288, 3
    %vm293 = vcmp.lt.s32.totalorder %v292, 2
    %vm294 = vcmp.eq.s32.totalorder %v292, 0
    %v295 = vxor.u32 %v290, 2147483648
    %v296 = vsel %vm294, %v289, %v295
    %vm297 = vcmp.eq.s32.totalorder %v292, 2
    %v298 = vxor.u32 %v289, 2147483648
    %v299 = vsel %vm297, %v298, %v290
    %v300 = vsel %vm293, %v296, %v299
    %v301 = vsel %vm291, nan, %v300
    %v302 = vand.u32 2147483647, %v196
    %vm303 = vcmp.le.f32.partialorder %v302, 0.7853982
    %vm304 = vcmp.lt.s32.totalorder %v196, 0
    %v305 = vand.u32 %v196, 2139095040
    %v306 = vshrl.u32 %v305, 23
    %v307 = vsub.s32 %v306, 127
    %v308 = vand.u32 2147483647, %v196
    %v309 = vand.u32 %v308, 8388607
    %v310 = vor.u32 %v309, 8388608
    %v311 = vsub.s32 0, %v310
    %v312 = vadd.s32 %v307, 1
    %vm313 = vcmp.gt.s32.totalorder %v312, 0
    %v314 = vsel %vm313, %v312, 0
    %v315 = vshrl.u32 %v314, 5
    %v316 = vand.u32 %v314, 31
    %v317 = vsub.s32 32, %v316
    %v318 = vshrl.u32 683565275, %v317
    %v319 = vshll.u32 683565275, %v316
    %v320 = vshrl.u32 2475754826, %v317
    %v321 = vor.u32 %v319, %v320
    %v322 = vshll.u32 2475754826, %v316
    %v323 = vshrl.u32 2131351028, %v317
    %v324 = vor.u32 %v322, %v323
    %v325 = vshll.u32 2131351028, %v316
    %v326 = vshrl.u32 2102212464, %v317
    %v327 = vor.u32 %v325, %v326
    %v328 = vshll.u32 2102212464, %v316
    %v329 = vshrl.u32 920167782, %v317
    %v330 = vor.u32 %v328, %v329
    %v331 = vshll.u32 920167782, %v316
    %v332 = vshrl.u32 1326507024, %v317
    %v333 = vor.u32 %v331, %v332
    %vm334 = vcmp.lt.s32.totalorder %v315, 1
    %vm335 = vcmp.lt.s32.totalorder %v315, 2
    %vm336 = vcmp.lt.s32.totalorder %v315, 3
    %vm337 = vcmp.lt.s32.totalorder %v315, 4
    %v338 = vsel %vm334, %v318, %v321
    %v339 = vsel %vm337, %v327, 2102212464
    %v340 = vsel %vm336, %v324, %v339
    %v341 = vsel %vm335, %v338, %v340
    %v342 = vsel %vm334, %v321, %v324
    %v343 = vsel %vm337, %v330, 920167782
    %v344 = vsel %vm336, %v327, %v343
    %v345 = vsel %vm335, %v342, %v344
    %v346 = vsel %vm334, %v324, %v327
    %v347 = vsel %vm337, %v333, 1326507024
    %v348 = vsel %vm336, %v330, %v347
    %v349 = vsel %vm335, %v346, %v348
    %v350 = vshll.u32 %v310, 8
    %v351 = vmul.u32.u64.compose %v350, %v349
    %v352 = vextract.low.u32 %v351
    %v353 = vextract.high.u32 %v351
    %v354 = vmul.u32.u64.compose %v350, %v345
    %v355 = vextract.low.u32 %v354
    %v356 = vextract.high.u32 %v354
    %v357 = vmul.u32 %v350, %v341
    %v358 = vadd.s32 %v353, %v355
    %vm359 = vc.u32 %v353, %v355
    %v360 = vadd.s32 %v356, 1
    %v361 = vsel %vm359, %v360, %v356
    %v362 = vadd.s32 %v357, %v361
    %v363 = vadd.s32 %v362, 536870912
    %v364 = vshrl.u32 %v363, 30
    %v365 = vshll.u32 %v364, 30
    %v366 = vsub.s32 %v362, %v365
    %vm367 = vcmp.lt.s32.totalorder %v366, 0
    %v368 = vsub.s32 0, %v366
    %v369 = vsel %vm367, %v368, %v366
    %v370 = vclz %v369
    %v371 = vsub.s32 %v370, 2
    %vm372 = vcmp.gt.s32.totalorder 0, %v371
    %v373 = vsel %vm372, 0, %v371
    %v374 = vsub.s32 32, %v373
    %v375 = vshll.u32 %v366, %v373
    %v376 = vshrl.u32 %v358, %v374
    %v377 = vor.u32 %v375, %v376
    %v378 = vsub.s32 4294967266, %v373
    %v379 = vadd.s32 %v378, 127
    %v380 = vshll.u32 %v379, 23
    %v381 = vor.u32 4788187, %v380
    %v382 = vand.u32 2147483647, %v381
    %v384 = vcvt.s32.f32 %v377
    %v385 = vmul.f32 %v384, %v382
    %v386 = vxor.u32 %v385, 2147483648
    %v387 = vsel %vm304, %v386, %v385
    %v388 = vsub.s32 4, %v364
    %v389 = vsel %vm304, %v388, %v364
    %v390 = vsel %vm303, %v196, %v387
    %v391 = vsel %vm303, 0, %v389
    %v392 = vcosq.f32.pop %v390
    %v393 = vsinq.f32.pop %v390
    %vm394 = vweird.f32 %v196
    %v395 = vand.u32 %v391, 3
    %vm396 = vcmp.lt.s32.totalorder %v395, 2
    %vm397 = vcmp.eq.s32.totalorder %v395, 0
    %v398 = vxor.u32 %v393, 2147483648
    %v399 = vsel %vm397, %v392, %v398
    %vm400 = vcmp.eq.s32.totalorder %v395, 2
    %v401 = vxor.u32 %v392, 2147483648
    %v402 = vsel %vm400, %v401, %v393
    %v403 = vsel %vm396, %v399, %v402
    %v404 = vsel %vm394, nan, %v403
    %v405 = vand.u32 2147483647, %v197
    %vm406 = vcmp.le.f32.partialorder %v405, 0.7853982
    %vm407 = vcmp.lt.s32.totalorder %v197, 0
    %v408 = vand.u32 %v197, 2139095040
    %v409 = vshrl.u32 %v408, 23
    %v410 = vsub.s32 %v409, 127
    %v411 = vand.u32 2147483647, %v197
    %v412 = vand.u32 %v411, 8388607
    %v413 = vor.u32 %v412, 8388608
    %v414 = vsub.s32 0, %v413
    %v415 = vadd.s32 %v410, 1
    %vm416 = vcmp.gt.s32.totalorder %v415, 0
    %v417 = vsel %vm416, %v415, 0
    %v418 = vshrl.u32 %v417, 5
    %v419 = vand.u32 %v417, 31
    %v420 = vsub.s32 32, %v419
    %v421 = vshrl.u32 683565275, %v420
    %v422 = vshll.u32 683565275, %v419
    %v423 = vshrl.u32 2475754826, %v420
    %v424 = vor.u32 %v422, %v423
    %v425 = vshll.u32 2475754826, %v419
    %v426 = vshrl.u32 2131351028, %v420
    %v427 = vor.u32 %v425, %v426
    %v428 = vshll.u32 2131351028, %v419
    %v429 = vshrl.u32 2102212464, %v420
    %v430 = vor.u32 %v428, %v429
    %v431 = vshll.u32 2102212464, %v419
    %v432 = vshrl.u32 920167782, %v420
    %v433 = vor.u32 %v431, %v432
    %v434 = vshll.u32 920167782, %v419
    %v435 = vshrl.u32 1326507024, %v420
    %v436 = vor.u32 %v434, %v435
    %vm437 = vcmp.lt.s32.totalorder %v418, 1
    %vm438 = vcmp.lt.s32.totalorder %v418, 2
    %vm439 = vcmp.lt.s32.totalorder %v418, 3
    %vm440 = vcmp.lt.s32.totalorder %v418, 4
    %v441 = vsel %vm437, %v421, %v424
    %v442 = vsel %vm440, %v430, 2102212464
    %v443 = vsel %vm439, %v427, %v442
    %v444 = vsel %vm438, %v441, %v443
    %v445 = vsel %vm437, %v424, %v427
    %v446 = vsel %vm440, %v433, 920167782
    %v447 = vsel %vm439, %v430, %v446
    %v448 = vsel %vm438, %v445, %v447
    %v449 = vsel %vm437, %v427, %v430
    %v450 = vsel %vm440, %v436, 1326507024
    %v451 = vsel %vm439, %v433, %v450
    %v452 = vsel %vm438, %v449, %v451
    %v453 = vshll.u32 %v413, 8
    %v454 = vmul.u32.u64.compose %v453, %v452
    %v455 = vextract.low.u32 %v454
    %v456 = vextract.high.u32 %v454
    %v457 = vmul.u32.u64.compose %v453, %v448
    %v458 = vextract.low.u32 %v457
    %v459 = vextract.high.u32 %v457
    %v460 = vmul.u32 %v453, %v444
    %v461 = vadd.s32 %v456, %v458
    %vm462 = vc.u32 %v456, %v458
    %v463 = vadd.s32 %v459, 1
    %v464 = vsel %vm462, %v463, %v459
    %v465 = vadd.s32 %v460, %v464
    %v466 = vadd.s32 %v465, 536870912
    %v467 = vshrl.u32 %v466, 30
    %v468 = vshll.u32 %v467, 30
    %v469 = vsub.s32 %v465, %v468
    %vm470 = vcmp.lt.s32.totalorder %v469, 0
    %v471 = vsub.s32 0, %v469
    %v472 = vsel %vm470, %v471, %v469
    %v473 = vclz %v472
    %v474 = vsub.s32 %v473, 2
    %vm475 = vcmp.gt.s32.totalorder 0, %v474
    %v476 = vsel %vm475, 0, %v474
    %v477 = vsub.s32 32, %v476
    %v478 = vshll.u32 %v469, %v476
    %v479 = vshrl.u32 %v461, %v477
    %v480 = vor.u32 %v478, %v479
    %v481 = vsub.s32 4294967266, %v476
    %v482 = vadd.s32 %v481, 127
    %v483 = vshll.u32 %v482, 23
    %v484 = vor.u32 4788187, %v483
    %v485 = vand.u32 2147483647, %v484
    %v487 = vcvt.s32.f32 %v480
    %v488 = vmul.f32 %v487, %v485
    %v489 = vxor.u32 %v488, 2147483648
    %v490 = vsel %vm407, %v489, %v488
    %v491 = vsub.s32 4, %v467
    %v492 = vsel %vm407, %v491, %v467
    %v493 = vsel %vm406, %v197, %v490
    %v494 = vsel %vm406, 0, %v492
    %v495 = vcosq.f32.pop %v493
    %v496 = vsinq.f32.pop %v493
    %vm497 = vweird.f32 %v197
    %v498 = vand.u32 %v494, 3
    %vm499 = vcmp.lt.s32.totalorder %v498, 2
    %vm500 = vcmp.eq.s32.totalorder %v498, 0
    %v501 = vxor.u32 %v496, 2147483648
    %v502 = vsel %vm500, %v495, %v501
    %vm503 = vcmp.eq.s32.totalorder %v498, 2
    %v504 = vxor.u32 %v495, 2147483648
    %v505 = vsel %vm503, %v504, %v496
    %v506 = vsel %vm499, %v502, %v505
    %v507 = vsel %vm497, nan, %v506
    %v508 = vand.u32 2147483647, %v198
    %vm509 = vcmp.le.f32.partialorder %v508, 0.7853982
    %vm510 = vcmp.lt.s32.totalorder %v198, 0
    %v511 = vand.u32 %v198, 2139095040
    %v512 = vshrl.u32 %v511, 23
    %v513 = vsub.s32 %v512, 127
    %v514 = vand.u32 2147483647, %v198
    %v515 = vand.u32 %v514, 8388607
    %v516 = vor.u32 %v515, 8388608
    %v517 = vsub.s32 0, %v516
    %v518 = vadd.s32 %v513, 1
    %vm519 = vcmp.gt.s32.totalorder %v518, 0
    %v520 = vsel %vm519, %v518, 0
    %v521 = vshrl.u32 %v520, 5
    %v522 = vand.u32 %v520, 31
    %v523 = vsub.s32 32, %v522
    %v524 = vshrl.u32 683565275, %v523
    %v525 = vshll.u32 683565275, %v522
    %v526 = vshrl.u32 2475754826, %v523
    %v527 = vor.u32 %v525, %v526
    %v528 = vshll.u32 2475754826, %v522
    %v529 = vshrl.u32 2131351028, %v523
    %v530 = vor.u32 %v528, %v529
    %v531 = vshll.u32 2131351028, %v522
    %v532 = vshrl.u32 2102212464, %v523
    %v533 = vor.u32 %v531, %v532
    %v534 = vshll.u32 2102212464, %v522
    %v535 = vshrl.u32 920167782, %v523
    %v536 = vor.u32 %v534, %v535
    %v537 = vshll.u32 920167782, %v522
    %v538 = vshrl.u32 1326507024, %v523
    %v539 = vor.u32 %v537, %v538
    %vm540 = vcmp.lt.s32.totalorder %v521, 1
    %vm541 = vcmp.lt.s32.totalorder %v521, 2
    %vm542 = vcmp.lt.s32.totalorder %v521, 3
    %vm543 = vcmp.lt.s32.totalorder %v521, 4
    %v544 = vsel %vm540, %v524, %v527
    %v545 = vsel %vm543, %v533, 2102212464
    %v546 = vsel %vm542, %v530, %v545
    %v547 = vsel %vm541, %v544, %v546
    %v548 = vsel %vm540, %v527, %v530
    %v549 = vsel %vm543, %v536, 920167782
    %v550 = vsel %vm542, %v533, %v549
    %v551 = vsel %vm541, %v548, %v550
    %v552 = vsel %vm540, %v530, %v533
    %v553 = vsel %vm543, %v539, 1326507024
    %v554 = vsel %vm542, %v536, %v553
    %v555 = vsel %vm541, %v552, %v554
    %v556 = vshll.u32 %v516, 8
    %v557 = vmul.u32.u64.compose %v556, %v555
    %v558 = vextract.low.u32 %v557
    %v559 = vextract.high.u32 %v557
    %v560 = vmul.u32.u64.compose %v556, %v551
    %v561 = vextract.low.u32 %v560
    %v562 = vextract.high.u32 %v560
    %v563 = vmul.u32 %v556, %v547
    %v564 = vadd.s32 %v559, %v561
    %vm565 = vc.u32 %v559, %v561
    %v566 = vadd.s32 %v562, 1
    %v567 = vsel %vm565, %v566, %v562
    %v568 = vadd.s32 %v563, %v567
    %v569 = vadd.s32 %v568, 536870912
    %v570 = vshrl.u32 %v569, 30
    %v571 = vshll.u32 %v570, 30
    %v572 = vsub.s32 %v568, %v571
    %vm573 = vcmp.lt.s32.totalorder %v572, 0
    %v574 = vsub.s32 0, %v572
    %v575 = vsel %vm573, %v574, %v572
    %v576 = vclz %v575
    %v577 = vsub.s32 %v576, 2
    %vm578 = vcmp.gt.s32.totalorder 0, %v577
    %v579 = vsel %vm578, 0, %v577
    %v580 = vsub.s32 32, %v579
    %v581 = vshll.u32 %v572, %v579
    %v582 = vshrl.u32 %v564, %v580
    %v583 = vor.u32 %v581, %v582
    %v584 = vsub.s32 4294967266, %v579
    %v585 = vadd.s32 %v584, 127
    %v586 = vshll.u32 %v585, 23
    %v587 = vor.u32 4788187, %v586
    %v588 = vand.u32 2147483647, %v587
    %v590 = vcvt.s32.f32 %v583
    %v591 = vmul.f32 %v590, %v588
    %v592 = vxor.u32 %v591, 2147483648
    %v593 = vsel %vm510, %v592, %v591
    %v594 = vsub.s32 4, %v570
    %v595 = vsel %vm510, %v594, %v570
    %v596 = vsel %vm509, %v198, %v593
    %v597 = vsel %vm509, 0, %v595
    %v598 = vcosq.f32.pop %v596
    %v599 = vsinq.f32.pop %v596
    %vm600 = vweird.f32 %v198
    %v601 = vand.u32 %v597, 3
    %vm602 = vcmp.lt.s32.totalorder %v601, 2
    %vm603 = vcmp.eq.s32.totalorder %v601, 0
    %v604 = vxor.u32 %v599, 2147483648
    %v605 = vsel %vm603, %v598, %v604
    %vm606 = vcmp.eq.s32.totalorder %v601, 2
    %v607 = vxor.u32 %v598, 2147483648
    %v608 = vsel %vm606, %v607, %v599
    %v609 = vsel %vm602, %v605, %v608
    %v610 = vsel %vm600, nan, %v609
    %v611 = vmul.f32 %v191, %v301
    %v612 = vmul.f32 %v192, %v404
    %v613 = vmul.f32 %v193, %v507
    %v614 = vmul.f32 %v194, %v610
    %v615 = vand.u32 2147483647, %v195
    %vm616 = vcmp.le.f32.partialorder %v615, 0.7853982
    %vm617 = vcmp.lt.s32.totalorder %v195, 0
    %v618 = vand.u32 %v195, 2139095040
    %v619 = vshrl.u32 %v618, 23
    %v620 = vsub.s32 %v619, 127
    %v621 = vand.u32 2147483647, %v195
    %v622 = vand.u32 %v621, 8388607
    %v623 = vor.u32 %v622, 8388608
    %v624 = vsub.s32 0, %v623
    %v625 = vadd.s32 %v620, 1
    %vm626 = vcmp.gt.s32.totalorder %v625, 0
    %v627 = vsel %vm626, %v625, 0
    %v628 = vshrl.u32 %v627, 5
    %v629 = vand.u32 %v627, 31
    %v630 = vsub.s32 32, %v629
    %v631 = vshrl.u32 683565275, %v630
    %v632 = vshll.u32 683565275, %v629
    %v633 = vshrl.u32 2475754826, %v630
    %v634 = vor.u32 %v632, %v633
    %v635 = vshll.u32 2475754826, %v629
    %v636 = vshrl.u32 2131351028, %v630
    %v637 = vor.u32 %v635, %v636
    %v638 = vshll.u32 2131351028, %v629
    %v639 = vshrl.u32 2102212464, %v630
    %v640 = vor.u32 %v638, %v639
    %v641 = vshll.u32 2102212464, %v629
    %v642 = vshrl.u32 920167782, %v630
    %v643 = vor.u32 %v641, %v642
    %v644 = vshll.u32 920167782, %v629
    %v645 = vshrl.u32 1326507024, %v630
    %v646 = vor.u32 %v644, %v645
    %vm647 = vcmp.lt.s32.totalorder %v628, 1
    %vm648 = vcmp.lt.s32.totalorder %v628, 2
    %vm649 = vcmp.lt.s32.totalorder %v628, 3
    %vm650 = vcmp.lt.s32.totalorder %v628, 4
    %v651 = vsel %vm647, %v631, %v634
    %v652 = vsel %vm650, %v640, 2102212464
    %v653 = vsel %vm649, %v637, %v652
    %v654 = vsel %vm648, %v651, %v653
    %v655 = vsel %vm647, %v634, %v637
    %v656 = vsel %vm650, %v643, 920167782
    %v657 = vsel %vm649, %v640, %v656
    %v658 = vsel %vm648, %v655, %v657
    %v659 = vsel %vm647, %v637, %v640
    %v660 = vsel %vm650, %v646, 1326507024
    %v661 = vsel %vm649, %v643, %v660
    %v662 = vsel %vm648, %v659, %v661
    %v663 = vshll.u32 %v623, 8
    %v664 = vmul.u32.u64.compose %v663, %v662
    %v665 = vextract.low.u32 %v664
    %v666 = vextract.high.u32 %v664
    %v667 = vmul.u32.u64.compose %v663, %v658
    %v668 = vextract.low.u32 %v667
    %v669 = vextract.high.u32 %v667
    %v670 = vmul.u32 %v663, %v654
    %v671 = vadd.s32 %v666, %v668
    %vm672 = vc.u32 %v666, %v668
    %v673 = vadd.s32 %v669, 1
    %v674 = vsel %vm672, %v673, %v669
    %v675 = vadd.s32 %v670, %v674
    %v676 = vadd.s32 %v675, 536870912
    %v677 = vshrl.u32 %v676, 30
    %v678 = vshll.u32 %v677, 30
    %v679 = vsub.s32 %v675, %v678
    %vm680 = vcmp.lt.s32.totalorder %v679, 0
    %v681 = vsub.s32 0, %v679
    %v682 = vsel %vm680, %v681, %v679
    %v683 = vclz %v682
    %v684 = vsub.s32 %v683, 2
    %vm685 = vcmp.gt.s32.totalorder 0, %v684
    %v686 = vsel %vm685, 0, %v684
    %v687 = vsub.s32 32, %v686
    %v688 = vshll.u32 %v679, %v686
    %v689 = vshrl.u32 %v671, %v687
    %v690 = vor.u32 %v688, %v689
    %v691 = vsub.s32 4294967266, %v686
    %v692 = vadd.s32 %v691, 127
    %v693 = vshll.u32 %v692, 23
    %v694 = vor.u32 4788187, %v693
    %v695 = vand.u32 2147483647, %v694
    %v697 = vcvt.s32.f32 %v690
    %v698 = vmul.f32 %v697, %v695
    %v699 = vxor.u32 %v698, 2147483648
    %v700 = vsel %vm617, %v699, %v698
    %v701 = vsub.s32 4, %v677
    %v702 = vsel %vm617, %v701, %v677
    %v703 = vsel %vm616, %v195, %v700
    %v704 = vsel %vm616, 0, %v702
    %v705 = vcosq.f32.pop %v703
    %v706 = vsinq.f32.pop %v703
    %vm707 = vweird.f32 %v195
    %v708 = vadd.s32 %v704, 3
    %v709 = vand.u32 %v708, 3
    %vm710 = vcmp.lt.s32.totalorder %v709, 2
    %vm711 = vcmp.eq.s32.totalorder %v709, 0
    %v712 = vxor.u32 %v706, 2147483648
    %v713 = vsel %vm711, %v705, %v712
    %vm714 = vcmp.eq.s32.totalorder %v709, 2
    %v715 = vxor.u32 %v705, 2147483648
    %v716 = vsel %vm714, %v715, %v706
    %v717 = vsel %vm710, %v713, %v716
    %v718 = vsel %vm707, nan, %v717
    %v719 = vand.u32 2147483647, %v196
    %vm720 = vcmp.le.f32.partialorder %v719, 0.7853982
    %vm721 = vcmp.lt.s32.totalorder %v196, 0
    %v722 = vand.u32 %v196, 2139095040
    %v723 = vshrl.u32 %v722, 23
    %v724 = vsub.s32 %v723, 127
    %v725 = vand.u32 2147483647, %v196
    %v726 = vand.u32 %v725, 8388607
    %v727 = vor.u32 %v726, 8388608
    %v728 = vsub.s32 0, %v727
    %v729 = vadd.s32 %v724, 1
    %vm730 = vcmp.gt.s32.totalorder %v729, 0
    %v731 = vsel %vm730, %v729, 0
    %v732 = vshrl.u32 %v731, 5
    %v733 = vand.u32 %v731, 31
    %v734 = vsub.s32 32, %v733
    %v735 = vshrl.u32 683565275, %v734
    %v736 = vshll.u32 683565275, %v733
    %v737 = vshrl.u32 2475754826, %v734
    %v738 = vor.u32 %v736, %v737
    %v739 = vshll.u32 2475754826, %v733
    %v740 = vshrl.u32 2131351028, %v734
    %v741 = vor.u32 %v739, %v740
    %v742 = vshll.u32 2131351028, %v733
    %v743 = vshrl.u32 2102212464, %v734
    %v744 = vor.u32 %v742, %v743
    %v745 = vshll.u32 2102212464, %v733
    %v746 = vshrl.u32 920167782, %v734
    %v747 = vor.u32 %v745, %v746
    %v748 = vshll.u32 920167782, %v733
    %v749 = vshrl.u32 1326507024, %v734
    %v750 = vor.u32 %v748, %v749
    %vm751 = vcmp.lt.s32.totalorder %v732, 1
    %vm752 = vcmp.lt.s32.totalorder %v732, 2
    %vm753 = vcmp.lt.s32.totalorder %v732, 3
    %vm754 = vcmp.lt.s32.totalorder %v732, 4
    %v755 = vsel %vm751, %v735, %v738
    %v756 = vsel %vm754, %v744, 2102212464
    %v757 = vsel %vm753, %v741, %v756
    %v758 = vsel %vm752, %v755, %v757
    %v759 = vsel %vm751, %v738, %v741
    %v760 = vsel %vm754, %v747, 920167782
    %v761 = vsel %vm753, %v744, %v760
    %v762 = vsel %vm752, %v759, %v761
    %v763 = vsel %vm751, %v741, %v744
    %v764 = vsel %vm754, %v750, 1326507024
    %v765 = vsel %vm753, %v747, %v764
    %v766 = vsel %vm752, %v763, %v765
    %v767 = vshll.u32 %v727, 8
    %v768 = vmul.u32.u64.compose %v767, %v766
    %v769 = vextract.low.u32 %v768
    %v770 = vextract.high.u32 %v768
    %v771 = vmul.u32.u64.compose %v767, %v762
    %v772 = vextract.low.u32 %v771
    %v773 = vextract.high.u32 %v771
    %v774 = vmul.u32 %v767, %v758
    %v775 = vadd.s32 %v770, %v772
    %vm776 = vc.u32 %v770, %v772
    %v777 = vadd.s32 %v773, 1
    %v778 = vsel %vm776, %v777, %v773
    %v779 = vadd.s32 %v774, %v778
    %v780 = vadd.s32 %v779, 536870912
    %v781 = vshrl.u32 %v780, 30
    %v782 = vshll.u32 %v781, 30
    %v783 = vsub.s32 %v779, %v782
    %vm784 = vcmp.lt.s32.totalorder %v783, 0
    %v785 = vsub.s32 0, %v783
    %v786 = vsel %vm784, %v785, %v783
    %v787 = vclz %v786
    %v788 = vsub.s32 %v787, 2
    %vm789 = vcmp.gt.s32.totalorder 0, %v788
    %v790 = vsel %vm789, 0, %v788
    %v791 = vsub.s32 32, %v790
    %v792 = vshll.u32 %v783, %v790
    %v793 = vshrl.u32 %v775, %v791
    %v794 = vor.u32 %v792, %v793
    %v795 = vsub.s32 4294967266, %v790
    %v796 = vadd.s32 %v795, 127
    %v797 = vshll.u32 %v796, 23
    %v798 = vor.u32 4788187, %v797
    %v799 = vand.u32 2147483647, %v798
    %v801 = vcvt.s32.f32 %v794
    %v802 = vmul.f32 %v801, %v799
    %v803 = vxor.u32 %v802, 2147483648
    %v804 = vsel %vm721, %v803, %v802
    %v805 = vsub.s32 4, %v781
    %v806 = vsel %vm721, %v805, %v781
    %v807 = vsel %vm720, %v196, %v804
    %v808 = vsel %vm720, 0, %v806
    %v809 = vcosq.f32.pop %v807
    %v810 = vsinq.f32.pop %v807
    %vm811 = vweird.f32 %v196
    %v812 = vadd.s32 %v808, 3
    %v813 = vand.u32 %v812, 3
    %vm814 = vcmp.lt.s32.totalorder %v813, 2
    %vm815 = vcmp.eq.s32.totalorder %v813, 0
    %v816 = vxor.u32 %v810, 2147483648
    %v817 = vsel %vm815, %v809, %v816
    %vm818 = vcmp.eq.s32.totalorder %v813, 2
    %v819 = vxor.u32 %v809, 2147483648
    %v820 = vsel %vm818, %v819, %v810
    %v821 = vsel %vm814, %v817, %v820
    %v822 = vsel %vm811, nan, %v821
    %v823 = vand.u32 2147483647, %v197
    %vm824 = vcmp.le.f32.partialorder %v823, 0.7853982
    %vm825 = vcmp.lt.s32.totalorder %v197, 0
    %v826 = vand.u32 %v197, 2139095040
    %v827 = vshrl.u32 %v826, 23
    %v828 = vsub.s32 %v827, 127
    %v829 = vand.u32 2147483647, %v197
    %v830 = vand.u32 %v829, 8388607
    %v831 = vor.u32 %v830, 8388608
    %v832 = vsub.s32 0, %v831
    %v833 = vadd.s32 %v828, 1
    %vm834 = vcmp.gt.s32.totalorder %v833, 0
    %v835 = vsel %vm834, %v833, 0
    %v836 = vshrl.u32 %v835, 5
    %v837 = vand.u32 %v835, 31
    %v838 = vsub.s32 32, %v837
    %v839 = vshrl.u32 683565275, %v838
    %v840 = vshll.u32 683565275, %v837
    %v841 = vshrl.u32 2475754826, %v838
    %v842 = vor.u32 %v840, %v841
    %v843 = vshll.u32 2475754826, %v837
    %v844 = vshrl.u32 2131351028, %v838
    %v845 = vor.u32 %v843, %v844
    %v846 = vshll.u32 2131351028, %v837
    %v847 = vshrl.u32 2102212464, %v838
    %v848 = vor.u32 %v846, %v847
    %v849 = vshll.u32 2102212464, %v837
    %v850 = vshrl.u32 920167782, %v838
    %v851 = vor.u32 %v849, %v850
    %v852 = vshll.u32 920167782, %v837
    %v853 = vshrl.u32 1326507024, %v838
    %v854 = vor.u32 %v852, %v853
    %vm855 = vcmp.lt.s32.totalorder %v836, 1
    %vm856 = vcmp.lt.s32.totalorder %v836, 2
    %vm857 = vcmp.lt.s32.totalorder %v836, 3
    %vm858 = vcmp.lt.s32.totalorder %v836, 4
    %v859 = vsel %vm855, %v839, %v842
    %v860 = vsel %vm858, %v848, 2102212464
    %v861 = vsel %vm857, %v845, %v860
    %v862 = vsel %vm856, %v859, %v861
    %v863 = vsel %vm855, %v842, %v845
    %v864 = vsel %vm858, %v851, 920167782
    %v865 = vsel %vm857, %v848, %v864
    %v866 = vsel %vm856, %v863, %v865
    %v867 = vsel %vm855, %v845, %v848
    %v868 = vsel %vm858, %v854, 1326507024
    %v869 = vsel %vm857, %v851, %v868
    %v870 = vsel %vm856, %v867, %v869
    %v871 = vshll.u32 %v831, 8
    %v872 = vmul.u32.u64.compose %v871, %v870
    %v873 = vextract.low.u32 %v872
    %v874 = vextract.high.u32 %v872
    %v875 = vmul.u32.u64.compose %v871, %v866
    %v876 = vextract.low.u32 %v875
    %v877 = vextract.high.u32 %v875
    %v878 = vmul.u32 %v871, %v862
    %v879 = vadd.s32 %v874, %v876
    %vm880 = vc.u32 %v874, %v876
    %v881 = vadd.s32 %v877, 1
    %v882 = vsel %vm880, %v881, %v877
    %v883 = vadd.s32 %v878, %v882
    %v884 = vadd.s32 %v883, 536870912
    %v885 = vshrl.u32 %v884, 30
    %v886 = vshll.u32 %v885, 30
    %v887 = vsub.s32 %v883, %v886
    %vm888 = vcmp.lt.s32.totalorder %v887, 0
    %v889 = vsub.s32 0, %v887
    %v890 = vsel %vm888, %v889, %v887
    %v891 = vclz %v890
    %v892 = vsub.s32 %v891, 2
    %vm893 = vcmp.gt.s32.totalorder 0, %v892
    %v894 = vsel %vm893, 0, %v892
    %v895 = vsub.s32 32, %v894
    %v896 = vshll.u32 %v887, %v894
    %v897 = vshrl.u32 %v879, %v895
    %v898 = vor.u32 %v896, %v897
    %v899 = vsub.s32 4294967266, %v894
    %v900 = vadd.s32 %v899, 127
    %v901 = vshll.u32 %v900, 23
    %v902 = vor.u32 4788187, %v901
    %v903 = vand.u32 2147483647, %v902
    %v905 = vcvt.s32.f32 %v898
    %v906 = vmul.f32 %v905, %v903
    %v907 = vxor.u32 %v906, 2147483648
    %v908 = vsel %vm825, %v907, %v906
    %v909 = vsub.s32 4, %v885
    %v910 = vsel %vm825, %v909, %v885
    %v911 = vsel %vm824, %v197, %v908
    %v912 = vsel %vm824, 0, %v910
    %v913 = vcosq.f32.pop %v911
    %v914 = vsinq.f32.pop %v911
    %vm915 = vweird.f32 %v197
    %v916 = vadd.s32 %v912, 3
    %v917 = vand.u32 %v916, 3
    %vm918 = vcmp.lt.s32.totalorder %v917, 2
    %vm919 = vcmp.eq.s32.totalorder %v917, 0
    %v920 = vxor.u32 %v914, 2147483648
    %v921 = vsel %vm919, %v913, %v920
    %vm922 = vcmp.eq.s32.totalorder %v917, 2
    %v923 = vxor.u32 %v913, 2147483648
    %v924 = vsel %vm922, %v923, %v914
    %v925 = vsel %vm918, %v921, %v924
    %v926 = vsel %vm915, nan, %v925
    %v927 = vand.u32 2147483647, %v198
    %vm928 = vcmp.le.f32.partialorder %v927, 0.7853982
    %vm929 = vcmp.lt.s32.totalorder %v198, 0
    %v930 = vand.u32 %v198, 2139095040
    %v931 = vshrl.u32 %v930, 23
    %v932 = vsub.s32 %v931, 127
    %v933 = vand.u32 2147483647, %v198
    %v934 = vand.u32 %v933, 8388607
    %v935 = vor.u32 %v934, 8388608
    %v936 = vsub.s32 0, %v935
    %v937 = vadd.s32 %v932, 1
    %vm938 = vcmp.gt.s32.totalorder %v937, 0
    %v939 = vsel %vm938, %v937, 0
    %v940 = vshrl.u32 %v939, 5
    %v941 = vand.u32 %v939, 31
    %v942 = vsub.s32 32, %v941
    %v943 = vshrl.u32 683565275, %v942
    %v944 = vshll.u32 683565275, %v941
    %v945 = vshrl.u32 2475754826, %v942
    %v946 = vor.u32 %v944, %v945
    %v947 = vshll.u32 2475754826, %v941
    %v948 = vshrl.u32 2131351028, %v942
    %v949 = vor.u32 %v947, %v948
    %v950 = vshll.u32 2131351028, %v941
    %v951 = vshrl.u32 2102212464, %v942
    %v952 = vor.u32 %v950, %v951
    %v953 = vshll.u32 2102212464, %v941
    %v954 = vshrl.u32 920167782, %v942
    %v955 = vor.u32 %v953, %v954
    %v956 = vshll.u32 920167782, %v941
    %v957 = vshrl.u32 1326507024, %v942
    %v958 = vor.u32 %v956, %v957
    %vm959 = vcmp.lt.s32.totalorder %v940, 1
    %vm960 = vcmp.lt.s32.totalorder %v940, 2
    %vm961 = vcmp.lt.s32.totalorder %v940, 3
    %vm962 = vcmp.lt.s32.totalorder %v940, 4
    %v963 = vsel %vm959, %v943, %v946
    %v964 = vsel %vm962, %v952, 2102212464
    %v965 = vsel %vm961, %v949, %v964
    %v966 = vsel %vm960, %v963, %v965
    %v967 = vsel %vm959, %v946, %v949
    %v968 = vsel %vm962, %v955, 920167782
    %v969 = vsel %vm961, %v952, %v968
    %v970 = vsel %vm960, %v967, %v969
    %v971 = vsel %vm959, %v949, %v952
    %v972 = vsel %vm962, %v958, 1326507024
    %v973 = vsel %vm961, %v955, %v972
    %v974 = vsel %vm960, %v971, %v973
    %v975 = vshll.u32 %v935, 8
    %v976 = vmul.u32.u64.compose %v975, %v974
    %v977 = vextract.low.u32 %v976
    %v978 = vextract.high.u32 %v976
    %v979 = vmul.u32.u64.compose %v975, %v970
    %v980 = vextract.low.u32 %v979
    %v981 = vextract.high.u32 %v979
    %v982 = vmul.u32 %v975, %v966
    %v983 = vadd.s32 %v978, %v980
    %vm984 = vc.u32 %v978, %v980
    %v985 = vadd.s32 %v981, 1
    %v986 = vsel %vm984, %v985, %v981
    %v987 = vadd.s32 %v982, %v986
    %v988 = vadd.s32 %v987, 536870912
    %v989 = vshrl.u32 %v988, 30
    %v990 = vshll.u32 %v989, 30
    %v991 = vsub.s32 %v987, %v990
    %vm992 = vcmp.lt.s32.totalorder %v991, 0
    %v993 = vsub.s32 0, %v991
    %v994 = vsel %vm992, %v993, %v991
    %v995 = vclz %v994
    %v996 = vsub.s32 %v995, 2
    %vm997 = vcmp.gt.s32.totalorder 0, %v996
    %v998 = vsel %vm997, 0, %v996
    %v999 = vsub.s32 32, %v998
    %v1000 = vshll.u32 %v991, %v998
    %v1001 = vshrl.u32 %v983, %v999
    %v1002 = vor.u32 %v1000, %v1001
    %v1003 = vsub.s32 4294967266, %v998
    %v1004 = vadd.s32 %v1003, 127
    %v1005 = vshll.u32 %v1004, 23
    %v1006 = vor.u32 4788187, %v1005
    %v1007 = vand.u32 2147483647, %v1006
    %v1009 = vcvt.s32.f32 %v1002
    %v1010 = vmul.f32 %v1009, %v1007
    %v1011 = vxor.u32 %v1010, 2147483648
    %v1012 = vsel %vm929, %v1011, %v1010
    %v1013 = vsub.s32 4, %v989
    %v1014 = vsel %vm929, %v1013, %v989
    %v1015 = vsel %vm928, %v198, %v1012
    %v1016 = vsel %vm928, 0, %v1014
    %v1017 = vcosq.f32.pop %v1015
    %v1018 = vsinq.f32.pop %v1015
    %vm1019 = vweird.f32 %v198
    %v1020 = vadd.s32 %v1016, 3
    %v1021 = vand.u32 %v1020, 3
    %vm1022 = vcmp.lt.s32.totalorder %v1021, 2
    %vm1023 = vcmp.eq.s32.totalorder %v1021, 0
    %v1024 = vxor.u32 %v1018, 2147483648
    %v1025 = vsel %vm1023, %v1017, %v1024
    %vm1026 = vcmp.eq.s32.totalorder %v1021, 2
    %v1027 = vxor.u32 %v1017, 2147483648
    %v1028 = vsel %vm1026, %v1027, %v1018
    %v1029 = vsel %vm1022, %v1025, %v1028
    %v1030 = vsel %vm1019, nan, %v1029
    %v1031 = vmul.f32 %v191, %v718
    %v1032 = vmul.f32 %v192, %v822
    %v1033 = vmul.f32 %v193, %v926
    %v1034 = vmul.f32 %v194, %v1030
    %v1035 = vld [vmem:[#allocation4] sm:$0xff]
    %v1036 = vld [vmem:[#allocation4 + $0x8] sm:$0xff]
    %v1037 = vld [vmem:[#allocation4 + $0x10] sm:$0xff]
    %v1038 = vld [vmem:[#allocation4 + $0x18] sm:$0xff]
    %v1039 = vadd.f32 %v1035, %v611
    %v1040 = vadd.f32 %v1036, %v612
    %v1041 = vadd.f32 %v1037, %v613
    %v1042 = vadd.f32 %v1038, %v614
    %v1043 = vadd.f32 %v1039, 0.0
    %v1044 = vadd.f32 %v1040, 0.0
    %v1045 = vadd.f32 %v1041, 0.0
    %v1046 = vadd.f32 %v1042, 0.0
    %1047 = vst [vmem:[#allocation7] sm:$0xff] %v1043
    %1048 = vst [vmem:[#allocation7 + $0x8] sm:$0xff] %v1044
    %1049 = vst [vmem:[#allocation7 + $0x10] sm:$0xff] %v1045
    %1050 = vst [vmem:[#allocation7 + $0x18] sm:$0xff] %v1046
    %v1051 = vld [vmem:[#allocation4 + $0x20] sm:$0xff]
    %v1052 = vld [vmem:[#allocation4 + $0x28] sm:$0xff]
    %v1053 = vld [vmem:[#allocation4 + $0x30] sm:$0xff]
    %v1054 = vld [vmem:[#allocation4 + $0x38] sm:$0xff]
    %v1055 = vadd.f32 %v1051, %v1031
    %v1056 = vadd.f32 %v1052, %v1032
    %v1057 = vadd.f32 %v1053, %v1033
    %v1058 = vadd.f32 %v1054, %v1034
    %v1059 = vadd.f32 %v1055, 0.0
    %v1060 = vadd.f32 %v1056, 0.0
    %v1061 = vadd.f32 %v1057, 0.0
    %v1062 = vadd.f32 %v1058, 0.0
    %1063 = vst [vmem:[#allocation7 + $0x20] sm:$0xff] %v1059
    %1064 = vst [vmem:[#allocation7 + $0x28] sm:$0xff] %v1060
    %1065 = vst [vmem:[#allocation7 + $0x30] sm:$0xff] %v1061
    %1066 = vst [vmem:[#allocation7 + $0x38] sm:$0xff] %v1062
    // Predicated region
    $region10: #{tpu_custom_call.1} parent=1 // pred_check
      _
    $region11: #{tpu_custom_call.1} parent=1 // pred_check_branch
      %1068 = sbr.rel (0) target = $region13
    $region12: #{tpu_custom_call.1} parent=1 // pred_region
      %s1070 = ssub.s32 1024, 1024
      %1071 = vsyncadd [#allocation6], %s1070
      %s1072 = sshll.u32 [#allocation7], 4
      %s1073 = int_to_ptr.vmem [resolvable:$true] %s1072
      %1078 = dma.vmem_to_hbm [thread:$0]  %s1073, 1024, %s2, [#allocation6], 512, 512, 32
    $region13: #{tpu_custom_call.1} parent=1 // pred_fallthru
      _
    // Predicated region
    $region14: #{tpu_custom_call.1} parent=1 // pred_check
      _
    $region15: #{tpu_custom_call.1} parent=1 // pred_check_branch
      %1080 = sbr.rel (0) target = $region17
    $region16: #{tpu_custom_call.1} parent=1 // pred_region
      %1081 = dma.done [#allocation6], 1024
    $region17: #{tpu_custom_call.1} parent=1 // pred_fallthru
      _
    %1082 = vsyncpa [#allocation5], 1
    %1083 = vsyncpa [#allocation6], 1

</llo_original>
